<compile_context>
chip_gen: v7x
topology: tpu7x:2x2x1
jax: 0.10.0
libtpu: 0.0.40
codegen_flags: <defaults>
</compile_context>

<pallas_src>
import numpy as np

import jax
import jax.numpy as jnp
from jax.experimental import pallas as pl
from jax.experimental.pallas import tpu as pltpu


def _round_up(x, m):
    return (x + m - 1) // m * m


def _pick_tile(d, cap):
    """Largest multiple of 128 <= cap that divides d (d is a multiple of 128)."""
    t = min(d, cap)
    while d % t:
        t -= 128
    return t


# ---------------------------------------------------------------------------
# Kernel 1: tiled dense matmul for the Linear projection  xw = x @ W.T
# ---------------------------------------------------------------------------
def _proj_matmul_single_kernel(x_ref, w_ref, o_ref):
    # Whole K fits in one tile: no accumulator scratch, no predication.
    o_ref[...] = jnp.dot(x_ref[...], w_ref[...],
                         preferred_element_type=jnp.float32).astype(o_ref.dtype)


def _proj_matmul_acc_kernel(x_ref, w_ref, o_ref, acc_ref):
    k = pl.program_id(2)

    @pl.when(k == 0)
    def _():
        acc_ref[...] = jnp.zeros_like(acc_ref)

    acc_ref[...] += jnp.dot(x_ref[...], w_ref[...],
                            preferred_element_type=jnp.float32)

    @pl.when(k == pl.num_programs(2) - 1)
    def _():
        o_ref[...] = acc_ref[...].astype(o_ref.dtype)


def linear_no_bias(x_p, wt_p, out_dtype=jnp.bfloat16):
    """x_p: (Mp, Kp) bf16, wt_p: (Kp, Nn) bf16, all dims multiples of 128."""
    Mp, Kp = x_p.shape
    _, Nn = wt_p.shape
    tm = _pick_tile(Mp, 512)
    tn = _pick_tile(Nn, 512)
    tk = _pick_tile(Kp, 1024)
    ce = pl.CostEstimate(flops=2 * Mp * Kp * Nn, transcendentals=0,
                         bytes_accessed=2 * (Mp * Kp + Kp * Nn + Mp * Nn))

    if tk == Kp:                       # common GCN case: K fits a single tile
        return pl.pallas_call(
            _proj_matmul_single_kernel,
            out_shape=jax.ShapeDtypeStruct((Mp, Nn), out_dtype),
            grid_spec=pltpu.PrefetchScalarGridSpec(
                num_scalar_prefetch=0,
                grid=(Mp // tm, Nn // tn),
                in_specs=[
                    pl.BlockSpec((tm, Kp), lambda i, j: (i, 0)),
                    pl.BlockSpec((Kp, tn), lambda i, j: (0, j)),
                ],
                out_specs=pl.BlockSpec((tm, tn), lambda i, j: (i, j)),
            ),
            compiler_params=pltpu.CompilerParams(
                dimension_semantics=("parallel", "parallel")),
            cost_estimate=ce,
        )(x_p, wt_p)

    return pl.pallas_call(
        _proj_matmul_acc_kernel,
        out_shape=jax.ShapeDtypeStruct((Mp, Nn), out_dtype),
        grid_spec=pltpu.PrefetchScalarGridSpec(
            num_scalar_prefetch=0,
            grid=(Mp // tm, Nn // tn, Kp // tk),
            in_specs=[
                pl.BlockSpec((tm, tk), lambda i, j, k: (i, k)),
                pl.BlockSpec((tk, tn), lambda i, j, k: (k, j)),
            ],
            out_specs=pl.BlockSpec((tm, tn), lambda i, j, k: (i, j)),
            scratch_shapes=[pltpu.VMEM((tm, tn), jnp.float32)],
        ),
        compiler_params=pltpu.CompilerParams(
            dimension_semantics=("parallel", "parallel", "arbitrary")),
        cost_estimate=ce,
    )(x_p, wt_p)


# ---------------------------------------------------------------------------
# Kernel 2: block-sparse  relu(A @ xw)  over a flat schedule of stored blocks
#   Scalar-prefetched flat arrays (length P * part_len), indexed p*L + s:
#     slot  : index of the stored (B,B) block to multiply at this step
#     row   : output block-row of the step
#     col   : block-column (which (B,*) slab of xw to use)
#     first : 1 on the first stored block of a block-row -> zero the acc
#     last  : 1 on the last stored block of a block-row  -> ReLU + store
#     valid : 1 on real steps, 0 on per-part padding steps (clamped indices)
# ---------------------------------------------------------------------------
def _spmm_resident_kernel(slot_ref, row_ref, col_ref, first_ref, last_ref,
                          valid_ref, a_ref, xw_ref, o_ref, acc_ref):
    p = pl.program_id(0)
    s = pl.program_id(1)
    idx = p * pl.num_programs(1) + s
    B = a_ref.shape[0]

    @pl.when(first_ref[idx] == 1)
    def _():
        acc_ref[...] = jnp.zeros_like(acc_ref)

    @pl.when(valid_ref[idx] == 1)
    def _():
        c0 = pl.multiple_of(col_ref[idx] * B, B)
        acc_ref[...] += jnp.dot(a_ref[...], xw_ref[pl.ds(c0, B), :],
                                preferred_element_type=jnp.float32)

    @pl.when(last_ref[idx] == 1)
    def _():
        o_ref[...] = jnp.maximum(acc_ref[...], 0.0).astype(o_ref.dtype)


def _spmm_stream_kernel(slot_ref, row_ref, col_ref, first_ref, last_ref,
                        valid_ref, a_ref, xw_ref, o_ref, acc_ref):
    p = pl.program_id(0)
    s = pl.program_id(1)
    idx = p * pl.num_programs(1) + s

    @pl.when(first_ref[idx] == 1)
    def _():
        acc_ref[...] = jnp.zeros_like(acc_ref)

    @pl.when(valid_ref[idx] == 1)
    def _():
        acc_ref[...] += jnp.dot(a_ref[...], xw_ref[...],
                                preferred_element_type=jnp.float32)

    @pl.when(last_ref[idx] == 1)
    def _():
        o_ref[...] = jnp.maximum(acc_ref[...], 0.0).astype(o_ref.dtype)


def bsr_spmm_relu(blocks, sched, xw_p, *, num_parts, part_len):
    nnzb, B, _ = blocks.shape
    Np, Dp = xw_p.shape
    P = num_parts
    (sched_slot, sched_row, sched_col,
     sched_first, sched_last, sched_valid) = sched

    # VMEM budget: double-buffered resident xw + A tile + bf16 out tile + f32 acc.
    resident_need = (2 * Np * Dp * 2 + 2 * B * B * 2
                     + 2 * B * Dp * 2 + B * Dp * 4)
    resident = resident_need <= (40 << 20)     # leave headroom on v7x (64 MiB)
    vmem_limit = int(min(max(resident_need + (8 << 20), 32 << 20), 48 << 20))

    def a_index(p, s, slot, row, col, first, last, valid):
        return (slot[p * part_len + s], 0, 0)

    def o_index(p, s, slot, row, col, first, last, valid):
        return (row[p * part_len + s], 0)

    if resident:
        kernel = _spmm_resident_kernel

        def xw_index(p, s, slot, row, col, first, last, valid):
            return (0, 0)                       # whole xw stays in VMEM

        xw_spec = pl.BlockSpec((Np, Dp), xw_index)
        xw_bytes = Np * Dp * 2
    else:
        kernel = _spmm_stream_kernel

        def xw_index(p, s, slot, row, col, first, last, valid):
            return (col[p * part_len + s], 0)

        xw_spec = pl.BlockSpec((B, Dp), xw_index)
        xw_bytes = nnzb * B * Dp * 2

    ce = pl.CostEstimate(
        flops=2 * nnzb * B * B * Dp,
        transcendentals=0,
        bytes_accessed=int(blocks.size) * blocks.dtype.itemsize
                       + xw_bytes + Np * Dp * 2)

    return pl.pallas_call(
        kernel,
        out_shape=jax.ShapeDtypeStruct((Np, Dp), jnp.bfloat16),
        grid_spec=pltpu.PrefetchScalarGridSpec(
            num_scalar_prefetch=6,
            grid=(P, part_len),
            in_specs=[
                pl.BlockSpec((pl.Squeezed(), B, B), a_index),   # stored A block
                xw_spec,
            ],
            out_specs=pl.BlockSpec((B, Dp), o_index),
            scratch_shapes=[pltpu.VMEM((B, Dp), jnp.float32)],
        ),
        compiler_params=pltpu.CompilerParams(
            dimension_semantics=("parallel", "arbitrary"),
            vmem_limit_bytes=vmem_limit),
        cost_estimate=ce,
    )(sched_slot, sched_row, sched_col, sched_first, sched_last, sched_valid,
      blocks, xw_p)


# ---------------------------------------------------------------------------
# Block-sparse structure + flat schedule build (host / plain JAX glue)
# ---------------------------------------------------------------------------
def _build_block_structure(h, t, norm, N, B, num_parts):
    # TODO(synk): the data-dependent scatter / nonzero block-structure build
    # has no clean Pallas equivalent (irregular scatter); it stays JAX / host.
    Np = _round_up(N, B)
    R = C = Np // B

    br = (t // B).astype(jnp.int32)
    bc = (h // B).astype(jnp.int32)
    bid = br * C + bc

    pres2d = jnp.zeros((R, C), jnp.bool_).at[br, bc].set(True)
    # only truly-empty block-rows get one zero padding block so their output
    # tile is still produced (== relu(0) == 0). No forced column-0 elsewhere.
    row_has = pres2d.any(axis=1)
    pres2d = pres2d.at[:, 0].set(pres2d[:, 0] | ~row_has)
    present = pres2d.reshape(R * C)

    ids = jnp.nonzero(present)[0].astype(jnp.int32)     # sorted by (row, col)
    nnzb = int(ids.shape[0])
    slot_of_bid = jnp.zeros((R * C,), jnp.int32).at[ids].set(
        jnp.arange(nnzb, dtype=jnp.int32))
    e_slot = slot_of_bid[bid]
    blocks = jnp.zeros((nnzb, B, B), jnp.float32).at[
        e_slot, t % B, h % B].add(norm).astype(jnp.bfloat16)

    # ---- host-side schedule (small metadata) --------------------------------
    ids_np = np.asarray(jax.device_get(ids)).astype(np.int64)
    block_rows = ids_np // C
    block_cols = ids_np % C
    cnt = np.bincount(block_rows, minlength=R).astype(np.int64)      # all >= 1
    row_start = np.concatenate([[0], np.cumsum(cnt)[:-1]]).astype(np.int64)

    first_of = np.zeros(nnzb, np.int32)
    last_of = np.zeros(nnzb, np.int32)
    first_of[row_start] = 1
    last_of[row_start + cnt - 1] = 1

    # Contiguous, row-aligned parts, roughly balanced by stored-block count.
    # P = 2 keeps v7x megacore sharding; 1-TC chips simply loop over parts.
    P = max(1, min(int(num_parts), R))
    bounds = [0]
    for p in range(1, P):
        target = (p * nnzb) // P
        rb = int(np.searchsorted(row_start, target, side="left"))
        rb = min(max(rb, bounds[-1] + 1), R - (P - p))   # keep parts non-empty
        bounds.append(rb)
    bounds.append(R)
    ends = np.concatenate([row_start, [nnzb]]).astype(np.int64)
    part_start = ends[np.asarray(bounds[:-1])]
    part_end = ends[np.asarray(bounds[1:])]
    part_cnt = part_end - part_start                                  # all >= 1
    part_len = int(part_cnt.max())

    L = P * part_len
    sched_slot = np.zeros(L, np.int32)
    sched_row = np.zeros(L, np.int32)
    sched_col = np.zeros(L, np.int32)
    sched_first = np.zeros(L, np.int32)
    sched_last = np.zeros(L, np.int32)
    sched_valid = np.zeros(L, np.int32)
    steps = np.arange(part_len)
    for p in range(P):
        n_p = int(part_cnt[p])
        g = part_start[p] + np.minimum(steps, n_p - 1)   # clamp dead steps
        valid = (steps < n_p).astype(np.int32)
        sl = slice(p * part_len, (p + 1) * part_len)
        sched_slot[sl] = g
        sched_row[sl] = block_rows[g]
        sched_col[sl] = block_cols[g]
        sched_valid[sl] = valid
        sched_first[sl] = np.where(valid == 1, first_of[g], 0)
        sched_last[sl] = np.where(valid == 1, last_of[g], 0)

    sched = tuple(jnp.asarray(a) for a in (
        sched_slot, sched_row, sched_col, sched_first, sched_last, sched_valid))
    return blocks, sched, P, part_len, Np


# ---------------------------------------------------------------------------
# Forward pass
# ---------------------------------------------------------------------------
def gcn_forward(x, h, t, w, *, block=128, num_parts=2):
    """Pallas implementation of GCN.forward.

    x: (N, Din) float32 node embeddings
    h: (T,) or (T,1) int edge "head" indices (columns of the sparse adjacency)
    t: (T,) or (T,1) int edge "tail" indices (rows of the sparse adjacency)
    w: (Dout, Din) float32 Linear weight (bias-free), as in nn.Linear
    block: adjacency block size B (128 favours v5e; sweep 128/256 on v6e/v7x)
    num_parts: row-aligned parallel parts of the SpMM schedule (2 => v7x cores)

    NOTE: not jittable end-to-end (the block-sparse structure is data
    dependent); call eagerly per graph.
    """
    h = jnp.asarray(h).reshape(-1).astype(jnp.int32)
    t = jnp.asarray(t).reshape(-1).astype(jnp.int32)
    N, Din = x.shape
    Dout = w.shape[0]
    B = block

    # degree + symmetric normalization (inf for isolated nodes, as in torch)
    deg = jnp.zeros((N,), dtype=x.dtype).at[h].add(
        jnp.ones_like(h, dtype=x.dtype))
    deg_inv_sqrt = deg ** -0.5
    norm = (deg_inv_sqrt[t] * deg_inv_sqrt[h]).astype(jnp.float32)

    # padding to TPU-friendly shapes
    Np = _round_up(N, B)
    Dinp = _round_up(Din, 128)
    Dp = _round_up(Dout, 128)
    x_p = jnp.zeros((Np, Dinp), jnp.bfloat16).at[:N, :Din].set(
        x.astype(jnp.bfloat16))
    wt_p = jnp.zeros((Dinp, Dp), jnp.bfloat16).at[:Din, :Dout].set(
        w.T.astype(jnp.bfloat16))

    # Pallas kernel 1: xw = x @ W.T (bf16 inputs, f32 accumulation)
    xw_p = linear_no_bias(x_p, wt_p)

    # block-sparse adjacency + flat schedule over stored blocks
    blocks, sched, P, part_len, _ = _build_block_structure(
        h, t, norm, N, B, num_parts)

    # Pallas kernel 2: relu(A @ xw), one grid step per stored block
    out_p = bsr_spmm_relu(blocks, sched, xw_p, num_parts=P, part_len=part_len)
    return out_p[:N, :Dout].astype(x.dtype)


if __name__ == "__main__":
    key = jax.random.PRNGKey(0)
    N, DIN, DOUT, T_EXTRA = 256, 96, 64, 256
    k1, k2, k3, k4 = jax.random.split(key, 4)

    x = jax.random.normal(k1, (N, DIN), dtype=jnp.float32)
    # every node appears at least once as a head -> all degrees >= 1, so
    # deg^{-1/2} is finite and the numeric reference check is meaningful.
    h = jnp.concatenate([
        jnp.arange(N, dtype=jnp.int32),
        jax.random.randint(k2, (T_EXTRA,), 0, N, dtype=jnp.int32),
    ])
    t = jax.random.randint(k3, (N + T_EXTRA,), 0, N, dtype=jnp.int32)
    # nn.Linear(DIN, DOUT, bias=False) default init: U(-1/sqrt(DIN), 1/sqrt(DIN))
    bound = 1.0 / (DIN ** 0.5)
    w = jax.random.uniform(k4, (DOUT, DIN), jnp.float32,
                           minval=-bound, maxval=bound)

    out = jax.block_until_ready(gcn_forward(x, h, t, w, block=128))
    assert out.shape == (N, DOUT)

    # ---- references --------------------------------------------------------
    deg = jnp.zeros((N,), jnp.float32).at[h].add(1.0)
    dis = deg ** -0.5
    norm = dis[t] * dis[h]

    # (a) pure-f32 reference of the module's math (bf16-quantization tolerance)
    xw_f32 = x @ w.T
    ref_f32 = jax.nn.relu(
        jax.ops.segment_sum(norm[:, None] * xw_f32[h], t, num_segments=N))
    assert jnp.allclose(out, ref_f32, atol=1e-1, rtol=1e-1), float(
        jnp.max(jnp.abs(out - ref_f32)))

    # (b) reference with the same bf16 input quantization as the kernels (tight)
    xw_q = jnp.dot(x.astype(jnp.bfloat16), w.T.astype(jnp.bfloat16),
                   preferred_element_type=jnp.float32)
    xw_q = xw_q.astype(jnp.bfloat16).astype(jnp.float32)
    a_q = jnp.zeros((N, N), jnp.float32).at[t, h].add(norm)
    a_q = a_q.astype(jnp.bfloat16).astype(jnp.float32)
    ref_q = jax.nn.relu(a_q @ xw_q)
    assert jnp.allclose(out, ref_q, atol=2e-2, rtol=2e-2), float(
        jnp.max(jnp.abs(out - ref_q)))

    print("KERNEL_OK")
</pallas_src>

<mosaic_0001>
module attributes {stable_mosaic.version = 11 : i64} {
  func.func @_proj_matmul_single_kernel(%arg0: i32, %arg1: i32, %arg2: memref<256x128xbf16, #tpu.memory_space<vmem>>, %arg3: memref<128x128xbf16, #tpu.memory_space<vmem>>, %arg4: memref<256x128xbf16, #tpu.memory_space<vmem>>) attributes {dimension_semantics = [#tpu.dimension_semantics<parallel>, #tpu.dimension_semantics<parallel>], iteration_bounds = array<i64: 1, 1>, scalar_prefetch = 0 : i64, scratch_operands = 0 : i64, tpu.core_type = #tpu.core_type<tc>, window_params = [{transform_indices = @transform_0, window_bounds = array<i64: 256, 128>}, {transform_indices = @transform_1, window_bounds = array<i64: 128, 128>}, {transform_indices = @transform_2, window_bounds = array<i64: 256, 128>}]} {
    %c0 = arith.constant 0 : index
    %c0_0 = arith.constant 0 : index
    %0 = vector.load %arg2[%c0, %c0_0] : memref<256x128xbf16, #tpu.memory_space<vmem>>, vector<256x128xbf16>
    %c0_1 = arith.constant 0 : index
    %c0_2 = arith.constant 0 : index
    %1 = vector.load %arg3[%c0_1, %c0_2] : memref<128x128xbf16, #tpu.memory_space<vmem>>, vector<128x128xbf16>
    %cst = arith.constant dense<0.000000e+00> : vector<256x128xf32>
    %2 = tpu.matmul %0, %1, %cst {dimension_numbers = #tpu.dot_dimension_numbers<[1], [0], [0], [1], [0, 0, 1, 1], [], []>} : vector<256x128xbf16>, vector<128x128xbf16>, vector<256x128xf32> -> vector<256x128xf32>
    %3 = arith.truncf %2 : vector<256x128xf32> to vector<256x128xbf16>
    %c0_3 = arith.constant 0 : index
    %c0_4 = arith.constant 0 : index
    %4 = vector.load %arg4[%c0_3, %c0_4] : memref<256x128xbf16, #tpu.memory_space<vmem>>, vector<256x128xbf16>
    tpu.vector_store %arg4[%c0_3, %c0_4], %3 {strides = array<i32>} : memref<256x128xbf16, #tpu.memory_space<vmem>>, vector<256x128xbf16>,
    return
  }
  func.func @transform_0(%arg0: i32, %arg1: i32) -> (i32, i32) {
    %c0_i32 = arith.constant 0 : i32
    %c0_i32_0 = arith.constant 0 : i32
    return %arg0, %c0_i32 : i32, i32
  }
  func.func @transform_1(%arg0: i32, %arg1: i32) -> (i32, i32) {
    %c0_i32 = arith.constant 0 : i32
    %c0_i32_0 = arith.constant 0 : i32
    return %c0_i32, %arg1 : i32, i32
  }
  func.func @transform_2(%arg0: i32, %arg1: i32) -> (i32, i32) {
    %c0_i32 = arith.constant 0 : i32
    return %arg0, %arg1 : i32, i32
  }
}

</mosaic_0001>

<llo_original>
// kernel: tpu_custom_call.1
$region0: #{tpu_custom_call.1}
  #allocation0 [shape = 'u32[]', space=smem, size = 0x4, offset = 0x4, fixed_abs, tag = 'smem constant byte address 0x4 - core index']
  #allocation1 [shape = 'u32[144,128]{1,0:T(1,128)}', space=vmem, size = 0x12000, scoped, tag = 'internal scratch']
  %s0 = inlined_call_operand.hbm [shape: bf16[256,128], index: 0, kind: input, shape index: {}]
  %s1 = inlined_call_operand.hbm [shape: bf16[128,128], index: 1, kind: input, shape index: {}]
  %s2 = inlined_call_operand.hbm [shape: bf16[256,128], index: 2, kind: output, shape index: {}]
  %s3 = sld [smem:[#allocation0]]
  $region26: #{tpu_custom_call.1} parent=0
    _
  %s5 = ssub.s32 1, %s3
  %s6 = scalar_select 0, %s5, %s3
  $region1: #{tpu_custom_call.1} parent=0
    #allocation2 [shape = 'u8[65536]{0}', space=vmem, size = 0x10000, scoped, tag = 'input window, operand 0, single buffered']
    #allocation3 [shape = 's32[1]{0}', space=sflag, size = 0x4, scoped, tag = 'scoped memory for tpu_custom_call.1']
    #allocation4 [shape = 's32[1]{0}', space=sflag, size = 0x4, scoped, tag = 'scoped memory for tpu_custom_call.1']
    #allocation5 [shape = 'u8[32768]{0}', space=vmem, size = 0x8000, scoped, tag = 'input window, operand 1, single buffered']
    #allocation6 [shape = 's32[1]{0}', space=sflag, size = 0x4, scoped, tag = 'scoped memory for tpu_custom_call.1']
    #allocation7 [shape = 'u8[65536]{0}', space=vmem, size = 0x10000, scoped, tag = 'output window, operand 0, single buffered']
    %7 = vsyncpa [#allocation3], 0
    %8 = vsyncpa [#allocation6], 0
    %9 = vsyncpa [#allocation4], 0
    // Predicated region
    $region2: #{tpu_custom_call.1} parent=1 // pred_check
      _
    $region3: #{tpu_custom_call.1} parent=1 // pred_check_branch
      %11 = sbr.rel (0) target = $region5
    $region4: #{tpu_custom_call.1} parent=1 // pred_region
      %s13 = ssub.s32 2048, 2048
      %14 = vsyncadd [#allocation3], %s13
      %s15 = sshll.u32 [#allocation2], 4
      %s16 = int_to_ptr.vmem [resolvable:$true] %s15
      %21 = dma.hbm_to_vmem [thread:$0]  %s0, 2048, %s16, [#allocation3], 64, 64, 4
    $region5: #{tpu_custom_call.1} parent=1 // pred_fallthru
      _
    // Predicated region
    $region6: #{tpu_custom_call.1} parent=1 // pred_check
      _
    $region7: #{tpu_custom_call.1} parent=1 // pred_check_branch
      %23 = sbr.rel (0) target = $region9
    $region8: #{tpu_custom_call.1} parent=1 // pred_region
      %s25 = ssub.s32 1024, 1024
      %26 = vsyncadd [#allocation6], %s25
      %s27 = sshll.u32 [#allocation5], 4
      %s28 = int_to_ptr.vmem [resolvable:$true] %s27
      %33 = dma.hbm_to_vmem [thread:$0]  %s1, 1024, %s28, [#allocation6], 64, 64, 4
    $region9: #{tpu_custom_call.1} parent=1 // pred_fallthru
      _
    // Predicated region
    $region10: #{tpu_custom_call.1} parent=1 // pred_check
      _
    $region11: #{tpu_custom_call.1} parent=1 // pred_check_branch
      %35 = sbr.rel (0) target = $region13
    $region12: #{tpu_custom_call.1} parent=1 // pred_region
      %36 = dma.done [#allocation3], 2048
    $region13: #{tpu_custom_call.1} parent=1 // pred_fallthru
      _
    // Predicated region
    $region14: #{tpu_custom_call.1} parent=1 // pred_check
      _
    $region15: #{tpu_custom_call.1} parent=1 // pred_check_branch
      %38 = sbr.rel (0) target = $region17
    $region16: #{tpu_custom_call.1} parent=1 // pred_region
      %39 = dma.done [#allocation6], 1024
    $region17: #{tpu_custom_call.1} parent=1 // pred_fallthru
      _
    %v41 = vld [vmem:[#allocation2] sm:$0xf]
    %v42 = vld [vmem:[#allocation2 + $0x4] sm:$0xf]
    %v43 = vld [vmem:[#allocation2 + $0x8] sm:$0xf]
    %v44 = vld [vmem:[#allocation2 + $0xc] sm:$0xf]
    %v45 = vld [vmem:[#allocation2 + $0x10] sm:$0xf]
    %v46 = vld [vmem:[#allocation2 + $0x14] sm:$0xf]
    %v47 = vld [vmem:[#allocation2 + $0x18] sm:$0xf]
    %v48 = vld [vmem:[#allocation2 + $0x1c] sm:$0xf]
    %v49 = vld [vmem:[#allocation2 + $0x20] sm:$0xf]
    %v50 = vld [vmem:[#allocation2 + $0x24] sm:$0xf]
    %v51 = vld [vmem:[#allocation2 + $0x28] sm:$0xf]
    %v52 = vld [vmem:[#allocation2 + $0x2c] sm:$0xf]
    %v53 = vld [vmem:[#allocation2 + $0x30] sm:$0xf]
    %v54 = vld [vmem:[#allocation2 + $0x34] sm:$0xf]
    %v55 = vld [vmem:[#allocation2 + $0x38] sm:$0xf]
    %v56 = vld [vmem:[#allocation2 + $0x3c] sm:$0xf]
    %v57 = vld [vmem:[#allocation2 + $0x40] sm:$0xf]
    %v58 = vld [vmem:[#allocation2 + $0x44] sm:$0xf]
    %v59 = vld [vmem:[#allocation2 + $0x48] sm:$0xf]
    %v60 = vld [vmem:[#allocation2 + $0x4c] sm:$0xf]
    %v61 = vld [vmem:[#allocation2 + $0x50] sm:$0xf]
    %v62 = vld [vmem:[#allocation2 + $0x54] sm:$0xf]
    %v63 = vld [vmem:[#allocation2 + $0x58] sm:$0xf]
    %v64 = vld [vmem:[#allocation2 + $0x5c] sm:$0xf]
    %v65 = vld [vmem:[#allocation2 + $0x60] sm:$0xf]
    %v66 = vld [vmem:[#allocation2 + $0x64] sm:$0xf]
    %v67 = vld [vmem:[#allocation2 + $0x68] sm:$0xf]
    %v68 = vld [vmem:[#allocation2 + $0x6c] sm:$0xf]
    %v69 = vld [vmem:[#allocation2 + $0x70] sm:$0xf]
    %v70 = vld [vmem:[#allocation2 + $0x74] sm:$0xf]
    %v71 = vld [vmem:[#allocation2 + $0x78] sm:$0xf]
    %v72 = vld [vmem:[#allocation2 + $0x7c] sm:$0xf]
    %v73 = vld [vmem:[#allocation5] sm:$0xf]
    %v74 = vld [vmem:[#allocation5 + $0x4] sm:$0xf]
    %v75 = vld [vmem:[#allocation5 + $0x8] sm:$0xf]
    %v76 = vld [vmem:[#allocation5 + $0xc] sm:$0xf]
    %v77 = vld [vmem:[#allocation5 + $0x10] sm:$0xf]
    %v78 = vld [vmem:[#allocation5 + $0x14] sm:$0xf]
    %v79 = vld [vmem:[#allocation5 + $0x18] sm:$0xf]
    %v80 = vld [vmem:[#allocation5 + $0x1c] sm:$0xf]
    %v81 = vld [vmem:[#allocation5 + $0x20] sm:$0xf]
    %v82 = vld [vmem:[#allocation5 + $0x24] sm:$0xf]
    %v83 = vld [vmem:[#allocation5 + $0x28] sm:$0xf]
    %v84 = vld [vmem:[#allocation5 + $0x2c] sm:$0xf]
    %v85 = vld [vmem:[#allocation5 + $0x30] sm:$0xf]
    %v86 = vld [vmem:[#allocation5 + $0x34] sm:$0xf]
    %v87 = vld [vmem:[#allocation5 + $0x38] sm:$0xf]
    %v88 = vld [vmem:[#allocation5 + $0x3c] sm:$0xf]
    %v121 = vunpack.c.l.b16 %v41
    %v122 = vunpack.c.l.b16 %v42
    %v123 = vunpack.c.l.b16 %v43
    %v124 = vunpack.c.l.b16 %v44
    %v125 = vunpack.c.l.b16 %v45
    %v126 = vunpack.c.l.b16 %v46
    %v127 = vunpack.c.l.b16 %v47
    %v128 = vunpack.c.l.b16 %v48
    %v129 = vunpack.c.l.b16 %v49
    %v130 = vunpack.c.l.b16 %v50
    %v131 = vunpack.c.l.b16 %v51
    %v132 = vunpack.c.l.b16 %v52
    %v133 = vunpack.c.l.b16 %v53
    %v134 = vunpack.c.l.b16 %v54
    %v135 = vunpack.c.l.b16 %v55
    %v136 = vunpack.c.l.b16 %v56
    %v137 = vunpack.c.l.b16 %v57
    %v138 = vunpack.c.l.b16 %v58
    %v139 = vunpack.c.l.b16 %v59
    %v140 = vunpack.c.l.b16 %v60
    %v141 = vunpack.c.l.b16 %v61
    %v142 = vunpack.c.l.b16 %v62
    %v143 = vunpack.c.l.b16 %v63
    %v144 = vunpack.c.l.b16 %v64
    %v145 = vunpack.c.l.b16 %v65
    %v146 = vunpack.c.l.b16 %v66
    %v147 = vunpack.c.l.b16 %v67
    %v148 = vunpack.c.l.b16 %v68
    %v149 = vunpack.c.l.b16 %v69
    %v150 = vunpack.c.l.b16 %v70
    %v151 = vunpack.c.l.b16 %v71
    %v152 = vunpack.c.l.b16 %v72
    %v153 = vpack.c.b16 %v122, %v121
    %v154 = vpack.c.b16 %v124, %v123
    %v155 = vpack.c.b16 %v126, %v125
    %v156 = vpack.c.b16 %v128, %v127
    %v157 = vpack.c.b16 %v130, %v129
    %v158 = vpack.c.b16 %v132, %v131
    %v159 = vpack.c.b16 %v134, %v133
    %v160 = vpack.c.b16 %v136, %v135
    %v161 = vpack.c.b16 %v138, %v137
    %v162 = vpack.c.b16 %v140, %v139
    %v163 = vpack.c.b16 %v142, %v141
    %v164 = vpack.c.b16 %v144, %v143
    %v165 = vpack.c.b16 %v146, %v145
    %v166 = vpack.c.b16 %v148, %v147
    %v167 = vpack.c.b16 %v150, %v149
    %v168 = vpack.c.b16 %v152, %v151
    %v201 = vunpack.c.l.b16 %v73
    %v202 = vunpack.c.l.b16 %v74
    %v203 = vunpack.c.l.b16 %v75
    %v204 = vunpack.c.l.b16 %v76
    %v205 = vunpack.c.l.b16 %v77
    %v206 = vunpack.c.l.b16 %v78
    %v207 = vunpack.c.l.b16 %v79
    %v208 = vunpack.c.l.b16 %v80
    %v209 = vunpack.c.l.b16 %v81
    %v210 = vunpack.c.l.b16 %v82
    %v211 = vunpack.c.l.b16 %v83
    %v212 = vunpack.c.l.b16 %v84
    %v213 = vunpack.c.l.b16 %v85
    %v214 = vunpack.c.l.b16 %v86
    %v215 = vunpack.c.l.b16 %v87
    %v216 = vunpack.c.l.b16 %v88
    %v217 = vpack.c.b16 %v202, %v201
    %v218 = vpack.c.b16 %v204, %v203
    %v219 = vpack.c.b16 %v206, %v205
    %v220 = vpack.c.b16 %v208, %v207
    %v221 = vpack.c.b16 %v210, %v209
    %v222 = vpack.c.b16 %v212, %v211
    %v223 = vpack.c.b16 %v214, %v213
    %v224 = vpack.c.b16 %v216, %v215
    %233 = vmatprep.subr.bf16.mxu0 0
    %234 = vmatpush1.bf16.msra.mxu0 %v217
    %235 = vmatprep.subr.bf16.mxu0 0
    %236 = vmatpush1.bf16.msra.mxu0 %v218
    %237 = vmatprep.subr.bf16.mxu0 0
    %238 = vmatpush1.bf16.msra.mxu0 %v219
    %239 = vmatprep.subr.bf16.mxu0 0
    %240 = vmatpush1.bf16.msra.mxu0 %v220
    %241 = vmatprep.subr.bf16.mxu0 0
    %242 = vmatpush1.bf16.msra.mxu0 %v221
    %243 = vmatprep.subr.bf16.mxu0 0
    %244 = vmatpush1.bf16.msra.mxu0 %v222
    %245 = vmatprep.subr.bf16.mxu0 0
    %246 = vmatpush1.bf16.msra.mxu0 %v223
    %247 = vmatprep.subr.bf16.mxu0 0
    %248 = vmatpush1.bf16.msra.mxu0 %v224
    %249 = vmatprep.subr.bf16.mxu0 0
    %250 = vmatpush1.bf16.msra.mxu0 0
    %251 = vmatprep.subr.bf16.mxu0 0
    %252 = vmatpush1.bf16.msra.mxu0 0
    %253 = vmatprep.subr.bf16.mxu0 0
    %254 = vmatpush1.bf16.msra.mxu0 0
    %255 = vmatprep.subr.bf16.mxu0 0
    %256 = vmatpush1.bf16.msra.mxu0 0
    %257 = vmatprep.subr.bf16.mxu0 0
    %258 = vmatpush1.bf16.msra.mxu0 0
    %259 = vmatprep.subr.bf16.mxu0 0
    %260 = vmatpush1.bf16.msra.mxu0 0
    %261 = vmatprep.subr.bf16.mxu0 0
    %262 = vmatpush1.bf16.msra.mxu0 0
    %263 = vmatprep.subr.bf16.mxu0 0
    %264 = vmatpush1.bf16.msra.mxu0 0
    %265 = vmatprep.mubr.bf16.mxu0 0
    %266 = vmatmul.mubr.bf16.gmra.mrb[0].mxu0 %v153
    %v267 = vpop.f32.mrb[0].mxu0
    %v268 = vadd.f32 0.0, %v267
    %v269 = vpop.f32.mrb[0].mxu0
    %v270 = vpop.f32.mrb[0].mxu0
    %v271 = vadd.f32 0.0, %v270
    %v272 = vpop.f32.mrb[0].mxu0
    %273 = vmatprep.mubr.bf16.mxu0 0
    %274 = vmatmul.mubr.bf16.gmra.mrb[0].mxu0 %v154
    %v275 = vpop.f32.mrb[0].mxu0
    %v276 = vadd.f32 0.0, %v275
    %v277 = vpop.f32.mrb[0].mxu0
    %v278 = vpop.f32.mrb[0].mxu0
    %v279 = vadd.f32 0.0, %v278
    %v280 = vpop.f32.mrb[0].mxu0
    %281 = vmatprep.mubr.bf16.mxu0 0
    %282 = vmatmul.mubr.bf16.gmra.mrb[0].mxu0 %v155
    %v283 = vpop.f32.mrb[0].mxu0
    %v284 = vadd.f32 0.0, %v283
    %v285 = vpop.f32.mrb[0].mxu0
    %v286 = vpop.f32.mrb[0].mxu0
    %v287 = vadd.f32 0.0, %v286
    %v288 = vpop.f32.mrb[0].mxu0
    %289 = vmatprep.mubr.bf16.mxu0 0
    %290 = vmatmul.mubr.bf16.gmra.mrb[0].mxu0 %v156
    %v291 = vpop.f32.mrb[0].mxu0
    %v292 = vadd.f32 0.0, %v291
    %v293 = vpop.f32.mrb[0].mxu0
    %v294 = vpop.f32.mrb[0].mxu0
    %v295 = vadd.f32 0.0, %v294
    %v296 = vpop.f32.mrb[0].mxu0
    %297 = vmatprep.mubr.bf16.mxu0 0
    %298 = vmatmul.mubr.bf16.gmra.mrb[0].mxu0 %v157
    %v299 = vpop.f32.mrb[0].mxu0
    %v300 = vadd.f32 0.0, %v299
    %v301 = vpop.f32.mrb[0].mxu0
    %v302 = vpop.f32.mrb[0].mxu0
    %v303 = vadd.f32 0.0, %v302
    %v304 = vpop.f32.mrb[0].mxu0
    %305 = vmatprep.mubr.bf16.mxu0 0
    %306 = vmatmul.mubr.bf16.gmra.mrb[0].mxu0 %v158
    %v307 = vpop.f32.mrb[0].mxu0
    %v308 = vadd.f32 0.0, %v307
    %v309 = vpop.f32.mrb[0].mxu0
    %v310 = vpop.f32.mrb[0].mxu0
    %v311 = vadd.f32 0.0, %v310
    %v312 = vpop.f32.mrb[0].mxu0
    %313 = vmatprep.mubr.bf16.mxu0 0
    %314 = vmatmul.mubr.bf16.gmra.mrb[0].mxu0 %v159
    %v315 = vpop.f32.mrb[0].mxu0
    %v316 = vadd.f32 0.0, %v315
    %v317 = vpop.f32.mrb[0].mxu0
    %v318 = vpop.f32.mrb[0].mxu0
    %v319 = vadd.f32 0.0, %v318
    %v320 = vpop.f32.mrb[0].mxu0
    %321 = vmatprep.mubr.bf16.mxu0 0
    %322 = vmatmul.mubr.bf16.gmra.mrb[0].mxu0 %v160
    %v323 = vpop.f32.mrb[0].mxu0
    %v324 = vadd.f32 0.0, %v323
    %v325 = vpop.f32.mrb[0].mxu0
    %v326 = vpop.f32.mrb[0].mxu0
    %v327 = vadd.f32 0.0, %v326
    %v328 = vpop.f32.mrb[0].mxu0
    %329 = vmatprep.mubr.bf16.mxu0 0
    %330 = vmatmul.mubr.bf16.gmra.mrb[0].mxu0 %v161
    %v331 = vpop.f32.mrb[0].mxu0
    %v332 = vadd.f32 0.0, %v331
    %v333 = vpop.f32.mrb[0].mxu0
    %v334 = vpop.f32.mrb[0].mxu0
    %v335 = vadd.f32 0.0, %v334
    %v336 = vpop.f32.mrb[0].mxu0
    %337 = vmatprep.mubr.bf16.mxu0 0
    %338 = vmatmul.mubr.bf16.gmra.mrb[0].mxu0 %v162
    %v339 = vpop.f32.mrb[0].mxu0
    %v340 = vadd.f32 0.0, %v339
    %v341 = vpop.f32.mrb[0].mxu0
    %v342 = vpop.f32.mrb[0].mxu0
    %v343 = vadd.f32 0.0, %v342
    %v344 = vpop.f32.mrb[0].mxu0
    %345 = vmatprep.mubr.bf16.mxu0 0
    %346 = vmatmul.mubr.bf16.gmra.mrb[0].mxu0 %v163
    %v347 = vpop.f32.mrb[0].mxu0
    %v348 = vadd.f32 0.0, %v347
    %v349 = vpop.f32.mrb[0].mxu0
    %v350 = vpop.f32.mrb[0].mxu0
    %v351 = vadd.f32 0.0, %v350
    %v352 = vpop.f32.mrb[0].mxu0
    %353 = vmatprep.mubr.bf16.mxu0 0
    %354 = vmatmul.mubr.bf16.gmra.mrb[0].mxu0 %v164
    %v355 = vpop.f32.mrb[0].mxu0
    %v356 = vadd.f32 0.0, %v355
    %v357 = vpop.f32.mrb[0].mxu0
    %v358 = vpop.f32.mrb[0].mxu0
    %v359 = vadd.f32 0.0, %v358
    %v360 = vpop.f32.mrb[0].mxu0
    %361 = vmatprep.mubr.bf16.mxu0 0
    %362 = vmatmul.mubr.bf16.gmra.mrb[0].mxu0 %v165
    %v363 = vpop.f32.mrb[0].mxu0
    %v364 = vadd.f32 0.0, %v363
    %v365 = vpop.f32.mrb[0].mxu0
    %v366 = vpop.f32.mrb[0].mxu0
    %v367 = vadd.f32 0.0, %v366
    %v368 = vpop.f32.mrb[0].mxu0
    %369 = vmatprep.mubr.bf16.mxu0 0
    %370 = vmatmul.mubr.bf16.gmra.mrb[0].mxu0 %v166
    %v371 = vpop.f32.mrb[0].mxu0
    %v372 = vadd.f32 0.0, %v371
    %v373 = vpop.f32.mrb[0].mxu0
    %v374 = vpop.f32.mrb[0].mxu0
    %v375 = vadd.f32 0.0, %v374
    %v376 = vpop.f32.mrb[0].mxu0
    %377 = vmatprep.mubr.bf16.mxu0 0
    %378 = vmatmul.mubr.bf16.gmra.mrb[0].mxu0 %v167
    %v379 = vpop.f32.mrb[0].mxu0
    %v380 = vadd.f32 0.0, %v379
    %v381 = vpop.f32.mrb[0].mxu0
    %v382 = vpop.f32.mrb[0].mxu0
    %v383 = vadd.f32 0.0, %v382
    %v384 = vpop.f32.mrb[0].mxu0
    %385 = vmatprep.mubr.bf16.mxu0 0
    %386 = vmatmul.mubr.bf16.gmra.mrb[0].mxu0 %v168
    %v387 = vpop.f32.mrb[0].mxu0
    %v388 = vadd.f32 0.0, %v387
    %v389 = vpop.f32.mrb[0].mxu0
    %v390 = vpop.f32.mrb[0].mxu0
    %v391 = vadd.f32 0.0, %v390
    %v392 = vpop.f32.mrb[0].mxu0
    %393 = vdwg.mxu0
    %v394 = vpack.c.bf16 %v271, %v268
    %v395 = vpack.c.bf16 %v279, %v276
    %v396 = vpack.c.bf16 %v287, %v284
    %v397 = vpack.c.bf16 %v295, %v292
    %v398 = vpack.c.bf16 %v303, %v300
    %v399 = vpack.c.bf16 %v311, %v308
    %v400 = vpack.c.bf16 %v319, %v316
    %v401 = vpack.c.bf16 %v327, %v324
    %v402 = vpack.c.bf16 %v335, %v332
    %v403 = vpack.c.bf16 %v343, %v340
    %v404 = vpack.c.bf16 %v351, %v348
    %v405 = vpack.c.bf16 %v359, %v356
    %v406 = vpack.c.bf16 %v367, %v364
    %v407 = vpack.c.bf16 %v375, %v372
    %v408 = vpack.c.bf16 %v383, %v380
    %v409 = vpack.c.bf16 %v391, %v388
    %v426 = vunpack.c.l.b16 %v394
    %v427 = vunpack.c.h.b16 %v394
    %v428 = vunpack.c.l.b16 %v395
    %v429 = vunpack.c.h.b16 %v395
    %v430 = vunpack.c.l.b16 %v396
    %v431 = vunpack.c.h.b16 %v396
    %v432 = vunpack.c.l.b16 %v397
    %v433 = vunpack.c.h.b16 %v397
    %v434 = vunpack.c.l.b16 %v398
    %v435 = vunpack.c.h.b16 %v398
    %v436 = vunpack.c.l.b16 %v399
    %v437 = vunpack.c.h.b16 %v399
    %v438 = vunpack.c.l.b16 %v400
    %v439 = vunpack.c.h.b16 %v400
    %v440 = vunpack.c.l.b16 %v401
    %v441 = vunpack.c.h.b16 %v401
    %v442 = vunpack.c.l.b16 %v402
    %v443 = vunpack.c.h.b16 %v402
    %v444 = vunpack.c.l.b16 %v403
    %v445 = vunpack.c.h.b16 %v403
    %v446 = vunpack.c.l.b16 %v404
    %v447 = vunpack.c.h.b16 %v404
    %v448 = vunpack.c.l.b16 %v405
    %v449 = vunpack.c.h.b16 %v405
    %v450 = vunpack.c.l.b16 %v406
    %v451 = vunpack.c.h.b16 %v406
    %v452 = vunpack.c.l.b16 %v407
    %v453 = vunpack.c.h.b16 %v407
    %v454 = vunpack.c.l.b16 %v408
    %v455 = vunpack.c.h.b16 %v408
    %v456 = vunpack.c.l.b16 %v409
    %v457 = vunpack.c.h.b16 %v409
    %v458 = vpack.c.b16 %v426, %v426
    %v459 = vpack.c.b16 %v427, %v427
    %v460 = vpack.c.b16 %v428, %v428
    %v461 = vpack.c.b16 %v429, %v429
    %v462 = vpack.c.b16 %v430, %v430
    %v463 = vpack.c.b16 %v431, %v431
    %v464 = vpack.c.b16 %v432, %v432
    %v465 = vpack.c.b16 %v433, %v433
    %v466 = vpack.c.b16 %v434, %v434
    %v467 = vpack.c.b16 %v435, %v435
    %v468 = vpack.c.b16 %v436, %v436
    %v469 = vpack.c.b16 %v437, %v437
    %v470 = vpack.c.b16 %v438, %v438
    %v471 = vpack.c.b16 %v439, %v439
    %v472 = vpack.c.b16 %v440, %v440
    %v473 = vpack.c.b16 %v441, %v441
    %v474 = vpack.c.b16 %v442, %v442
    %v475 = vpack.c.b16 %v443, %v443
    %v476 = vpack.c.b16 %v444, %v444
    %v477 = vpack.c.b16 %v445, %v445
    %v478 = vpack.c.b16 %v446, %v446
    %v479 = vpack.c.b16 %v447, %v447
    %v480 = vpack.c.b16 %v448, %v448
    %v481 = vpack.c.b16 %v449, %v449
    %v482 = vpack.c.b16 %v450, %v450
    %v483 = vpack.c.b16 %v451, %v451
    %v484 = vpack.c.b16 %v452, %v452
    %v485 = vpack.c.b16 %v453, %v453
    %v486 = vpack.c.b16 %v454, %v454
    %v487 = vpack.c.b16 %v455, %v455
    %v488 = vpack.c.b16 %v456, %v456
    %v489 = vpack.c.b16 %v457, %v457
    %522 = vst [vmem:[#allocation7] sm:$0xf] %v458
    %523 = vst [vmem:[#allocation7 + $0x4] sm:$0xf] %v459
    %524 = vst [vmem:[#allocation7 + $0x8] sm:$0xf] %v460
    %525 = vst [vmem:[#allocation7 + $0xc] sm:$0xf] %v461
    %526 = vst [vmem:[#allocation7 + $0x10] sm:$0xf] %v462
    %527 = vst [vmem:[#allocation7 + $0x14] sm:$0xf] %v463
    %528 = vst [vmem:[#allocation7 + $0x18] sm:$0xf] %v464
    %529 = vst [vmem:[#allocation7 + $0x1c] sm:$0xf] %v465
    %530 = vst [vmem:[#allocation7 + $0x20] sm:$0xf] %v466
    %531 = vst [vmem:[#allocation7 + $0x24] sm:$0xf] %v467
    %532 = vst [vmem:[#allocation7 + $0x28] sm:$0xf] %v468
    %533 = vst [vmem:[#allocation7 + $0x2c] sm:$0xf] %v469
    %534 = vst [vmem:[#allocation7 + $0x30] sm:$0xf] %v470
    %535 = vst [vmem:[#allocation7 + $0x34] sm:$0xf] %v471
    %536 = vst [vmem:[#allocation7 + $0x38] sm:$0xf] %v472
    %537 = vst [vmem:[#allocation7 + $0x3c] sm:$0xf] %v473
    %538 = vst [vmem:[#allocation7 + $0x40] sm:$0xf] %v474
    %539 = vst [vmem:[#allocation7 + $0x44] sm:$0xf] %v475
    %540 = vst [vmem:[#allocation7 + $0x48] sm:$0xf] %v476
    %541 = vst [vmem:[#allocation7 + $0x4c] sm:$0xf] %v477
    %542 = vst [vmem:[#allocation7 + $0x50] sm:$0xf] %v478
    %543 = vst [vmem:[#allocation7 + $0x54] sm:$0xf] %v479
    %544 = vst [vmem:[#allocation7 + $0x58] sm:$0xf] %v480
    %545 = vst [vmem:[#allocation7 + $0x5c] sm:$0xf] %v481
    %546 = vst [vmem:[#allocation7 + $0x60] sm:$0xf] %v482
    %547 = vst [vmem:[#allocation7 + $0x64] sm:$0xf] %v483
    %548 = vst [vmem:[#allocation7 + $0x68] sm:$0xf] %v484
    %549 = vst [vmem:[#allocation7 + $0x6c] sm:$0xf] %v485
    %550 = vst [vmem:[#allocation7 + $0x70] sm:$0xf] %v486
    %551 = vst [vmem:[#allocation7 + $0x74] sm:$0xf] %v487
    %552 = vst [vmem:[#allocation7 + $0x78] sm:$0xf] %v488
    %553 = vst [vmem:[#allocation7 + $0x7c] sm:$0xf] %v489
    // Predicated region
    $region18: #{tpu_custom_call.1} parent=1 // pred_check
      _
    $region19: #{tpu_custom_call.1} parent=1 // pred_check_branch
      %555 = sbr.rel (0) target = $region21
    $region20: #{tpu_custom_call.1} parent=1 // pred_region
      %s557 = ssub.s32 2048, 2048
      %558 = vsyncadd [#allocation4], %s557
      %s559 = sshll.u32 [#allocation7], 4
      %s560 = int_to_ptr.vmem [resolvable:$true] %s559
      %565 = dma.vmem_to_hbm [thread:$0]  %s560, 2048, %s2, [#allocation4], 64, 64, 4
    $region21: #{tpu_custom_call.1} parent=1 // pred_fallthru
      _
    // Predicated region
    $region22: #{tpu_custom_call.1} parent=1 // pred_check
      _
    $region23: #{tpu_custom_call.1} parent=1 // pred_check_branch
      %567 = sbr.rel (0) target = $region25
    $region24: #{tpu_custom_call.1} parent=1 // pred_region
      %568 = dma.done [#allocation4], 2048
    $region25: #{tpu_custom_call.1} parent=1 // pred_fallthru
      _
    %569 = vsyncpa [#allocation3], 1
    %570 = vsyncpa [#allocation6], 1
    %571 = vsyncpa [#allocation4], 1

</llo_original>
